<compile_context>
chip_gen: v5e
topology: v5e:2x2
jax: 0.10.0
libtpu: 0.0.40
codegen_flags: <defaults>
</compile_context>

<pallas_src>
import jax
import jax.numpy as jnp
from jax import lax
from jax.experimental import pallas as pl
from jax.experimental.pallas import tpu as pltpu


PACK = 8             # rows packed per sublane-row (8 * E=16 f32 -> 128 lanes)
CHUNK_SUBROWS = 256  # in-kernel compute chunk: 256 packed rows = 2048 rows


def _round_up(v, m):
    return ((v + m - 1) // m) * m


def _make_kernel(chunk, n_chunks):
    """Kernel over one [tr_tile, PACK*E] packed-input block."""

    def kernel(x_ref, w1_ref, b1_ref, w2_ref, b2_ref, out_ref):
        # x_ref  : [tr_tile, PACK*E]   packed input rows (lane-dense for E=16)
        # w1_ref : [PACK*E, PACK*H]    kron(I_8, W1^T)
        # b1_ref : [1, PACK*H]
        # w2_ref : [PACK*H, PACK*O]    kron(I_8, W2^T)
        # b2_ref : [1, PACK*O]
        # out_ref: [tr_tile, PACK*O]   packed output rows
        w1 = w1_ref[...]
        b1 = b1_ref[...]
        w2 = w2_ref[...]
        b2 = b2_ref[...]

        def compute(xb):
            h = jnp.dot(xb, w1, preferred_element_type=jnp.float32) + b1
            h = jnp.maximum(h, 0.0)
            return jnp.dot(h, w2, preferred_element_type=jnp.float32) + b2

        if n_chunks == 1:
            out_ref[...] = compute(x_ref[...]).astype(out_ref.dtype)
        else:
            # Chunk the lane-dense compute so the hidden activation stays small
            # and never caps the outer (DMA) tile size.
            def body(c, carry):
                r0 = pl.multiple_of(c * chunk, chunk)
                xb = x_ref[pl.ds(r0, chunk), :]
                out_ref[pl.ds(r0, chunk), :] = compute(xb).astype(out_ref.dtype)
                return carry

            lax.fori_loop(0, n_chunks, body, 0, unroll=True)

    return kernel


def bounds_update_forward(x, params, *, row_tile=32768):
    """Forward pass of BoundsUpdateNN.

    x      : [N, E] float32 input embedding vectors.
    params : dict with PyTorch-layout weights
             w1: [H, E], b1: [H], w2: [2, H], b2: [2].
    Returns [N, 2] float32.
    """
    n, e = x.shape
    h_dim = params["w1"].shape[0]
    o_dim = params["w2"].shape[0]

    w1 = params["w1"].astype(jnp.float32)   # [H, E]
    b1 = params["b1"].astype(jnp.float32)   # [H]
    w2 = params["w2"].astype(jnp.float32)   # [O, H]
    b2 = params["b2"].astype(jnp.float32)   # [O]

    # --- pack 8 rows per sublane-row (free contiguous reshape, no transpose) --
    n8 = _round_up(n, PACK)
    xs = x.astype(jnp.float32)
    if n8 != n:
        # At most PACK-1 extra zero rows; callers with very large N should pass
        # N % 8 == 0 so even this tiny copy never happens.
        xs = jnp.pad(xs, ((0, n8 - n), (0, 0)))
    tr_total = n8 // PACK
    xp = xs.reshape(tr_total, PACK * e)     # [N/8, 8E]; bitcast-equivalent

    # --- absorb the packing into block-diagonal weights (built once, tiny) ----
    eye = jnp.eye(PACK, dtype=jnp.float32)
    w1blk = jnp.einsum("ab,fh->afbh", eye, w1.T).reshape(PACK * e, PACK * h_dim)
    w2blk = jnp.einsum("ab,ho->ahbo", eye, w2.T).reshape(PACK * h_dim, PACK * o_dim)
    b1blk = jnp.tile(b1, PACK).reshape(1, PACK * h_dim)
    b2blk = jnp.tile(b2, PACK).reshape(1, PACK * o_dim)

    # --- tile selection (in packed sublane-rows; 1 subrow = 8 input rows) -----
    ck = CHUNK_SUBROWS
    tr_req = max(ck, ((row_tile // PACK) // ck) * ck)
    if tr_total <= tr_req:
        tr_tile, chunk = tr_total, tr_total          # single block, single chunk
    elif tr_total <= 2 * tr_req:
        # Split into ~2 blocks so megacore (v7x) has >= 2 "parallel" grid steps.
        tr_tile, chunk = _round_up(pl.cdiv(tr_total, 2), ck), ck
    else:
        tr_tile, chunk = tr_req, ck
    n_chunks = tr_tile // chunk
    grid = (pl.cdiv(tr_total, tr_tile),)             # partial tail block is masked

    in_specs = [
        pl.BlockSpec((tr_tile, PACK * e), lambda i: (i, 0)),   # packed x tile
        pl.BlockSpec(w1blk.shape, lambda i: (0, 0)),
        pl.BlockSpec(b1blk.shape, lambda i: (0, 0)),
        pl.BlockSpec(w2blk.shape, lambda i: (0, 0)),
        pl.BlockSpec(b2blk.shape, lambda i: (0, 0)),
    ]
    out_specs = pl.BlockSpec((tr_tile, PACK * o_dim), lambda i: (i, 0))

    flops = 2 * tr_total * (PACK * e * PACK * h_dim + PACK * h_dim * PACK * o_dim)
    bytes_accessed = 4 * (xp.size + tr_total * PACK * o_dim
                          + w1blk.size + b1blk.size + w2blk.size + b2blk.size)

    out_packed = pl.pallas_call(
        _make_kernel(chunk, n_chunks),
        out_shape=jax.ShapeDtypeStruct((tr_total, PACK * o_dim), jnp.float32),
        grid_spec=pl.GridSpec(grid=grid, in_specs=in_specs, out_specs=out_specs),
        compiler_params=pltpu.CompilerParams(
            dimension_semantics=("parallel",),
            # ~9 MiB working set at the default tile; explicit limit only to be
            # safely above v5e's 16 MiB default while staying well under v7x's
            # 64 MiB physical VMEM per TensorCore.
            vmem_limit_bytes=32 * 1024 * 1024,
        ),
        cost_estimate=pl.CostEstimate(
            flops=flops, transcendentals=0, bytes_accessed=bytes_accessed),
    )(xp, w1blk, b1blk, w2blk, b2blk)

    out = out_packed.reshape(n8, o_dim)   # free contiguous reshape back to [N8, 2]
    if n8 != n:
        out = out[:n]
    return out


def init_params(key, embedding_vector_size, hidden_layer_size):
    """PyTorch-default-style Linear init, stored in PyTorch [out, in] layout."""
    ks = jax.random.split(key, 4)
    E, H = embedding_vector_size, hidden_layer_size

    def lin(kw, kb, d_in, d_out):
        bound = 1.0 / jnp.sqrt(jnp.float32(d_in))
        w = jax.random.uniform(kw, (d_out, d_in), jnp.float32, -bound, bound)
        b = jax.random.uniform(kb, (d_out,), jnp.float32, -bound, bound)
        return w, b

    w1, b1 = lin(ks[0], ks[1], E, H)
    w2, b2 = lin(ks[2], ks[3], H, 2)
    return dict(w1=w1, b1=b1, w2=w2, b2=b2)


def reference_forward(x, p):
    h = jax.nn.relu(x @ p["w1"].T + p["b1"][None, :])
    return h @ p["w2"].T + p["b2"][None, :]


if __name__ == "__main__":
    E, H = 16, 32
    key = jax.random.PRNGKey(0)
    k_x1, k_x2, k_p = jax.random.split(key, 3)
    params = init_params(k_p, E, H)

    # Case 1: small N, not a multiple of 8 (single block, single chunk).
    N1 = 300
    x1 = jax.random.normal(k_x1, (N1, E), jnp.float32)
    out1 = jax.block_until_ready(bounds_update_forward(x1, params))
    ref1 = reference_forward(x1, params)
    assert out1.shape == (N1, 2)
    assert jnp.allclose(out1, ref1, atol=1e-4, rtol=1e-4)

    # Case 2: multi-step grid + masked partial tail block + in-kernel chunk loop.
    N2 = 9003
    x2 = jax.random.normal(k_x2, (N2, E), jnp.float32)
    out2 = jax.block_until_ready(bounds_update_forward(x2, params, row_tile=4096))
    ref2 = reference_forward(x2, params)
    assert out2.shape == (N2, 2)
    assert jnp.allclose(out2, ref2, atol=1e-4, rtol=1e-4)

    print("KERNEL_OK")
</pallas_src>

<mosaic_0001>
module attributes {stable_mosaic.version = 11 : i64} {
  func.func @kernel(%arg0: i32, %arg1: memref<38x128xf32, #tpu.memory_space<vmem>>, %arg2: memref<128x256xf32, #tpu.memory_space<vmem>>, %arg3: memref<1x256xf32, #tpu.memory_space<vmem>>, %arg4: memref<256x16xf32, #tpu.memory_space<vmem>>, %arg5: memref<1x16xf32, #tpu.memory_space<vmem>>, %arg6: memref<38x16xf32, #tpu.memory_space<vmem>>) attributes {dimension_semantics = [#tpu.dimension_semantics<parallel>], iteration_bounds = array<i64: 1>, scalar_prefetch = 0 : i64, scratch_operands = 0 : i64, tpu.core_type = #tpu.core_type<tc>, window_params = [{transform_indices = @transform_0, window_bounds = array<i64: 38, 128>}, {pipeline_mode = #tpu.pipeline_mode<synchronous>, transform_indices = @transform_1, window_bounds = array<i64: 128, 256>}, {pipeline_mode = #tpu.pipeline_mode<synchronous>, transform_indices = @transform_2, window_bounds = array<i64: 1, 256>}, {pipeline_mode = #tpu.pipeline_mode<synchronous>, transform_indices = @transform_3, window_bounds = array<i64: 256, 16>}, {pipeline_mode = #tpu.pipeline_mode<synchronous>, transform_indices = @transform_4, window_bounds = array<i64: 1, 16>}, {transform_indices = @transform_5, window_bounds = array<i64: 38, 16>}]} {
    %c0 = arith.constant 0 : index
    %c0_0 = arith.constant 0 : index
    %0 = vector.load %arg2[%c0, %c0_0] : memref<128x256xf32, #tpu.memory_space<vmem>>, vector<128x256xf32>
    %c0_1 = arith.constant 0 : index
    %c0_2 = arith.constant 0 : index
    %1 = vector.load %arg3[%c0_1, %c0_2] : memref<1x256xf32, #tpu.memory_space<vmem>>, vector<1x256xf32>
    %c0_3 = arith.constant 0 : index
    %c0_4 = arith.constant 0 : index
    %2 = vector.load %arg4[%c0_3, %c0_4] : memref<256x16xf32, #tpu.memory_space<vmem>>, vector<256x16xf32>
    %c0_5 = arith.constant 0 : index
    %c0_6 = arith.constant 0 : index
    %3 = vector.load %arg5[%c0_5, %c0_6] : memref<1x16xf32, #tpu.memory_space<vmem>>, vector<1x16xf32>
    %c0_7 = arith.constant 0 : index
    %c0_8 = arith.constant 0 : index
    %4 = vector.load %arg1[%c0_7, %c0_8] : memref<38x128xf32, #tpu.memory_space<vmem>>, vector<38x128xf32>
    %cst = arith.constant dense<0.000000e+00> : vector<38x256xf32>
    %5 = tpu.matmul %4, %0, %cst {dimension_numbers = #tpu.dot_dimension_numbers<[1], [0], [0], [1], [0, 0, 1, 1], [], []>} : vector<38x128xf32>, vector<128x256xf32>, vector<38x256xf32> -> vector<38x256xf32>
    %6 = vector.broadcast %1 : vector<1x256xf32> to vector<38x256xf32>
    %7 = arith.addf %5, %6 : vector<38x256xf32>
    %cst_9 = arith.constant 0.000000e+00 : f32
    %8 = vector.broadcast %cst_9 : f32 to vector<38x256xf32>
    %9 = arith.maximumf %7, %8 : vector<38x256xf32>
    %cst_10 = arith.constant dense<0.000000e+00> : vector<38x16xf32>
    %10 = tpu.matmul %9, %2, %cst_10 {dimension_numbers = #tpu.dot_dimension_numbers<[1], [0], [0], [1], [0, 0, 1, 1], [], []>} : vector<38x256xf32>, vector<256x16xf32>, vector<38x16xf32> -> vector<38x16xf32>
    %11 = vector.broadcast %3 : vector<1x16xf32> to vector<38x16xf32>
    %12 = arith.addf %10, %11 : vector<38x16xf32>
    %c0_11 = arith.constant 0 : index
    %c0_12 = arith.constant 0 : index
    %13 = vector.load %arg6[%c0_11, %c0_12] : memref<38x16xf32, #tpu.memory_space<vmem>>, vector<38x16xf32>
    tpu.vector_store %arg6[%c0_11, %c0_12], %12 {strides = array<i32>} : memref<38x16xf32, #tpu.memory_space<vmem>>, vector<38x16xf32>,
    return
  }
  func.func @transform_0(%arg0: i32) -> (i32, i32) {
    %c0_i32 = arith.constant 0 : i32
    %c0_i32_0 = arith.constant 0 : i32
    return %arg0, %c0_i32 : i32, i32
  }
  func.func @transform_1(%arg0: i32) -> (i32, i32) {
    %c0_i32 = arith.constant 0 : i32
    %c0_i32_0 = arith.constant 0 : i32
    %c0_i32_1 = arith.constant 0 : i32
    return %c0_i32, %c0_i32_0 : i32, i32
  }
  func.func @transform_2(%arg0: i32) -> (i32, i32) {
    %c0_i32 = arith.constant 0 : i32
    %c0_i32_0 = arith.constant 0 : i32
    %c0_i32_1 = arith.constant 0 : i32
    return %c0_i32, %c0_i32_0 : i32, i32
  }
  func.func @transform_3(%arg0: i32) -> (i32, i32) {
    %c0_i32 = arith.constant 0 : i32
    %c0_i32_0 = arith.constant 0 : i32
    %c0_i32_1 = arith.constant 0 : i32
    return %c0_i32, %c0_i32_0 : i32, i32
  }
  func.func @transform_4(%arg0: i32) -> (i32, i32) {
    %c0_i32 = arith.constant 0 : i32
    %c0_i32_0 = arith.constant 0 : i32
    %c0_i32_1 = arith.constant 0 : i32
    return %c0_i32, %c0_i32_0 : i32, i32
  }
  func.func @transform_5(%arg0: i32) -> (i32, i32) {
    %c0_i32 = arith.constant 0 : i32
    %c0_i32_0 = arith.constant 0 : i32
    return %arg0, %c0_i32 : i32, i32
  }
}

</mosaic_0001>

<llo_original>
// kernel: tpu_custom_call.1
$region0: #{tpu_custom_call.1}
  #allocation0 [shape = 'u32[]', space=smem, size = 0x4, offset = 0x4, fixed_abs, tag = 'smem constant byte address 0x4 - core index']
  #allocation1 [shape = 'u32[72,128]{1,0:T(1,128)}', space=vmem, size = 0x9000, scoped, tag = 'internal scratch']
  %s0 = inlined_call_operand.hbm [shape: f32[38,128], index: 0, kind: input, shape index: {}]
  %s1 = inlined_call_operand.vmem [shape: f32[128,256], index: 1, kind: input, shape index: {}]
  %s2 = inlined_call_operand.vmem [shape: f32[1,256], index: 2, kind: input, shape index: {}]
  %s3 = inlined_call_operand.vmem [shape: f32[256,16], index: 3, kind: input, shape index: {}]
  %s4 = inlined_call_operand.vmem [shape: f32[1,16], index: 4, kind: input, shape index: {}]
  %s5 = inlined_call_operand.vmem [shape: f32[38,16], index: 5, kind: output, shape index: {}]
  %s6 = sld [smem:[#allocation0]]
  $region34: #{tpu_custom_call.1} parent=0
    _
  %s8 = ssub.s32 1, %s6
  %s9 = scalar_select 0, %s8, %s6
  $region1: #{tpu_custom_call.1} parent=0
    #allocation2 [shape = 'u8[20480]{0}', space=vmem, size = 0x5000, scoped, tag = 'input window, operand 0, single buffered']
    #allocation3 [shape = 's32[1]{0}', space=sflag, size = 0x4, scoped, tag = 'scoped memory for tpu_custom_call.1']
    %10 = vsyncpa [#allocation3], 0
    // Predicated region
    $region2: #{tpu_custom_call.1} parent=1 // pred_check
      _
    $region3: #{tpu_custom_call.1} parent=1 // pred_check_branch
      %12 = sbr.rel (0) target = $region5
    $region4: #{tpu_custom_call.1} parent=1 // pred_region
      %14 = vsyncadd [#allocation3], 0
      %s15 = sshll.u32 %s0, 4
      %s16 = int_to_ptr.hbm [resolvable:$true] %s15
      %s17 = sshll.u32 [#allocation2], 4
      %s18 = int_to_ptr.vmem [resolvable:$true] %s17
      %23 = dma.hbm_to_vmem [thread:$0]  %s16, 640, %s18, [#allocation3], 128, 128, 8
    $region5: #{tpu_custom_call.1} parent=1 // pred_fallthru
      _
    // Predicated region
    $region6: #{tpu_custom_call.1} parent=1 // pred_check
      _
    $region7: #{tpu_custom_call.1} parent=1 // pred_check_branch
      %25 = sbr.rel (0) target = $region9
    $region8: #{tpu_custom_call.1} parent=1 // pred_region
      _
    $region9: #{tpu_custom_call.1} parent=1 // pred_fallthru
      _
    // Predicated region
    $region10: #{tpu_custom_call.1} parent=1 // pred_check
      _
    $region11: #{tpu_custom_call.1} parent=1 // pred_check_branch
      %27 = sbr.rel (0) target = $region13
    $region12: #{tpu_custom_call.1} parent=1 // pred_region
      _
    $region13: #{tpu_custom_call.1} parent=1 // pred_fallthru
      _
    // Predicated region
    $region14: #{tpu_custom_call.1} parent=1 // pred_check
      _
    $region15: #{tpu_custom_call.1} parent=1 // pred_check_branch
      %29 = sbr.rel (0) target = $region17
    $region16: #{tpu_custom_call.1} parent=1 // pred_region
      _
    $region17: #{tpu_custom_call.1} parent=1 // pred_fallthru
      _
    // Predicated region
    $region18: #{tpu_custom_call.1} parent=1 // pred_check
      _
    $region19: #{tpu_custom_call.1} parent=1 // pred_check_branch
      %31 = sbr.rel (0) target = $region21
    $region20: #{tpu_custom_call.1} parent=1 // pred_region
      _
    $region21: #{tpu_custom_call.1} parent=1 // pred_fallthru
      _
    // Predicated region
    $region22: #{tpu_custom_call.1} parent=1 // pred_check
      _
    $region23: #{tpu_custom_call.1} parent=1 // pred_check_branch
      %33 = sbr.rel (0) target = $region25
    $region24: #{tpu_custom_call.1} parent=1 // pred_region
      %35 = dma.done [#allocation3], 640
    $region25: #{tpu_custom_call.1} parent=1 // pred_fallthru
      _
    %v36 = vld [vmem:[%s1] sm:$0xff]
    %v37 = vld [vmem:[%s1 + $0x8] sm:$0xff]
    %v38 = vld [vmem:[%s1 + $0x10] sm:$0xff]
    %v39 = vld [vmem:[%s1 + $0x18] sm:$0xff]
    %v40 = vld [vmem:[%s1 + $0x20] sm:$0xff]
    %v41 = vld [vmem:[%s1 + $0x28] sm:$0xff]
    %v42 = vld [vmem:[%s1 + $0x30] sm:$0xff]
    %v43 = vld [vmem:[%s1 + $0x38] sm:$0xff]
    %v44 = vld [vmem:[%s1 + $0x40] sm:$0xff]
    %v45 = vld [vmem:[%s1 + $0x48] sm:$0xff]
    %v46 = vld [vmem:[%s1 + $0x50] sm:$0xff]
    %v47 = vld [vmem:[%s1 + $0x58] sm:$0xff]
    %v48 = vld [vmem:[%s1 + $0x60] sm:$0xff]
    %v49 = vld [vmem:[%s1 + $0x68] sm:$0xff]
    %v50 = vld [vmem:[%s1 + $0x70] sm:$0xff]
    %v51 = vld [vmem:[%s1 + $0x78] sm:$0xff]
    %v52 = vld [vmem:[%s1 + $0x80] sm:$0xff]
    %v53 = vld [vmem:[%s1 + $0x88] sm:$0xff]
    %v54 = vld [vmem:[%s1 + $0x90] sm:$0xff]
    %v55 = vld [vmem:[%s1 + $0x98] sm:$0xff]
    %v56 = vld [vmem:[%s1 + $0xa0] sm:$0xff]
    %v57 = vld [vmem:[%s1 + $0xa8] sm:$0xff]
    %v58 = vld [vmem:[%s1 + $0xb0] sm:$0xff]
    %v59 = vld [vmem:[%s1 + $0xb8] sm:$0xff]
    %v60 = vld [vmem:[%s1 + $0xc0] sm:$0xff]
    %v61 = vld [vmem:[%s1 + $0xc8] sm:$0xff]
    %v62 = vld [vmem:[%s1 + $0xd0] sm:$0xff]
    %v63 = vld [vmem:[%s1 + $0xd8] sm:$0xff]
    %v64 = vld [vmem:[%s1 + $0xe0] sm:$0xff]
    %v65 = vld [vmem:[%s1 + $0xe8] sm:$0xff]
    %v66 = vld [vmem:[%s1 + $0xf0] sm:$0xff]
    %v67 = vld [vmem:[%s1 + $0xf8] sm:$0xff]
    %v68 = vld [vmem:[%s2] sm:$0x3]
    %v69 = vld [vmem:[%s3] sm:$0xff]
    %v70 = vld [vmem:[%s3 + $0x8] sm:$0xff]
    %v71 = vld [vmem:[%s3 + $0x10] sm:$0xff]
    %v72 = vld [vmem:[%s3 + $0x18] sm:$0xff]
    %v73 = vld [vmem:[%s3 + $0x20] sm:$0xff]
    %v74 = vld [vmem:[%s3 + $0x28] sm:$0xff]
    %v75 = vld [vmem:[%s3 + $0x30] sm:$0xff]
    %v76 = vld [vmem:[%s3 + $0x38] sm:$0xff]
    %v77 = vld [vmem:[%s3 + $0x40] sm:$0xff]
    %v78 = vld [vmem:[%s3 + $0x48] sm:$0xff]
    %v79 = vld [vmem:[%s3 + $0x50] sm:$0xff]
    %v80 = vld [vmem:[%s3 + $0x58] sm:$0xff]
    %v81 = vld [vmem:[%s3 + $0x60] sm:$0xff]
    %v82 = vld [vmem:[%s3 + $0x68] sm:$0xff]
    %v83 = vld [vmem:[%s3 + $0x70] sm:$0xff]
    %v84 = vld [vmem:[%s3 + $0x78] sm:$0xff]
    %v85 = vld [vmem:[%s3 + $0x80] sm:$0xff]
    %v86 = vld [vmem:[%s3 + $0x88] sm:$0xff]
    %v87 = vld [vmem:[%s3 + $0x90] sm:$0xff]
    %v88 = vld [vmem:[%s3 + $0x98] sm:$0xff]
    %v89 = vld [vmem:[%s3 + $0xa0] sm:$0xff]
    %v90 = vld [vmem:[%s3 + $0xa8] sm:$0xff]
    %v91 = vld [vmem:[%s3 + $0xb0] sm:$0xff]
    %v92 = vld [vmem:[%s3 + $0xb8] sm:$0xff]
    %v93 = vld [vmem:[%s3 + $0xc0] sm:$0xff]
    %v94 = vld [vmem:[%s3 + $0xc8] sm:$0xff]
    %v95 = vld [vmem:[%s3 + $0xd0] sm:$0xff]
    %v96 = vld [vmem:[%s3 + $0xd8] sm:$0xff]
    %v97 = vld [vmem:[%s3 + $0xe0] sm:$0xff]
    %v98 = vld [vmem:[%s3 + $0xe8] sm:$0xff]
    %v99 = vld [vmem:[%s3 + $0xf0] sm:$0xff]
    %v100 = vld [vmem:[%s3 + $0xf8] sm:$0xff]
    %v101 = vld [vmem:[%s4] sm:$0x1]
    %v102 = vld [vmem:[#allocation2] sm:$0xff]
    %v103 = vld [vmem:[#allocation2 + $0x8] sm:$0xff]
    %v104 = vld [vmem:[#allocation2 + $0x10] sm:$0xff]
    %v105 = vld [vmem:[#allocation2 + $0x18] sm:$0xff]
    %v106 = vld [vmem:[#allocation2 + $0x20] sm:$0x3f]
    %v108 = vperm.slane %v68, 0
    %v109 = vperm.slane %v68, 1
    %112 = vmatpush.msra.mxu0 %v66
    %113 = vmatpush.msra.mxu0 %v64
    %114 = vmatpush.msra.mxu0 %v62
    %115 = vmatpush.msra.mxu0 %v60
    %116 = vmatpush.msra.mxu0 %v58
    %117 = vmatpush.msra.mxu0 %v56
    %118 = vmatpush.msra.mxu0 %v54
    %119 = vmatpush.msra.mxu0 %v52
    %120 = vmatpush.msra.mxu0 %v50
    %121 = vmatpush.msra.mxu0 %v48
    %122 = vmatpush.msra.mxu0 %v46
    %123 = vmatpush.msra.mxu0 %v44
    %124 = vmatpush.msra.mxu0 %v42
    %125 = vmatpush.msra.mxu0 %v40
    %126 = vmatpush.msra.mxu0 %v38
    %127 = vmatpush.msra.mxu0 %v36
    %128 = vmatmul.f32.gmra.mxu0 %v102
    %v129 = vpop.f32.mrf.mxu0
    %v130 = vadd.f32 %v108, %v129
    %131 = vmatmul.f32.gmra.mxu0 %v103
    %v132 = vpop.f32.mrf.mxu0
    %v133 = vadd.f32 %v108, %v132
    %134 = vmatmul.f32.gmra.mxu0 %v104
    %v135 = vpop.f32.mrf.mxu0
    %v136 = vadd.f32 %v108, %v135
    %137 = vmatmul.f32.gmra.mxu0 %v105
    %v138 = vpop.f32.mrf.mxu0
    %v139 = vadd.f32 %v108, %v138
    %140 = vmatmul.f32.gmra.mxu0 %v106
    %v141 = vpop.f32.mrf.mxu0
    %v142 = vadd.f32 %v108, %v141
    %143 = vdwg.mxu0
    %144 = vmatpush.msra.mxu0 %v67
    %145 = vmatpush.msra.mxu0 %v65
    %146 = vmatpush.msra.mxu0 %v63
    %147 = vmatpush.msra.mxu0 %v61
    %148 = vmatpush.msra.mxu0 %v59
    %149 = vmatpush.msra.mxu0 %v57
    %150 = vmatpush.msra.mxu0 %v55
    %151 = vmatpush.msra.mxu0 %v53
    %152 = vmatpush.msra.mxu0 %v51
    %153 = vmatpush.msra.mxu0 %v49
    %154 = vmatpush.msra.mxu0 %v47
    %155 = vmatpush.msra.mxu0 %v45
    %156 = vmatpush.msra.mxu0 %v43
    %157 = vmatpush.msra.mxu0 %v41
    %158 = vmatpush.msra.mxu0 %v39
    %159 = vmatpush.msra.mxu0 %v37
    %160 = vmatmul.f32.gmra.mxu0 %v102
    %v161 = vpop.f32.mrf.mxu0
    %v162 = vadd.f32 %v109, %v161
    %163 = vmatmul.f32.gmra.mxu0 %v103
    %v164 = vpop.f32.mrf.mxu0
    %v165 = vadd.f32 %v109, %v164
    %166 = vmatmul.f32.gmra.mxu0 %v104
    %v167 = vpop.f32.mrf.mxu0
    %v168 = vadd.f32 %v109, %v167
    %169 = vmatmul.f32.gmra.mxu0 %v105
    %v170 = vpop.f32.mrf.mxu0
    %v171 = vadd.f32 %v109, %v170
    %172 = vmatmul.f32.gmra.mxu0 %v106
    %v173 = vpop.f32.mrf.mxu0
    %v174 = vadd.f32 %v109, %v173
    %175 = vdwg.mxu0
    %v176 = vmax.f32 %v130, 0.0
    %v177 = vmax.f32 %v162, 0.0
    %v178 = vmax.f32 %v133, 0.0
    %v179 = vmax.f32 %v165, 0.0
    %v180 = vmax.f32 %v136, 0.0
    %v181 = vmax.f32 %v168, 0.0
    %v182 = vmax.f32 %v139, 0.0
    %v183 = vmax.f32 %v171, 0.0
    %v184 = vmax.f32 %v142, 0.0
    %v185 = vmax.f32 %v174, 0.0
    %v187 = vperm.slane %v101, 0
    %189 = vmatpush.msra.mxu0 %v84
    %190 = vmatpush.msra.mxu0 %v83
    %191 = vmatpush.msra.mxu0 %v82
    %192 = vmatpush.msra.mxu0 %v81
    %193 = vmatpush.msra.mxu0 %v80
    %194 = vmatpush.msra.mxu0 %v79
    %195 = vmatpush.msra.mxu0 %v78
    %196 = vmatpush.msra.mxu0 %v77
    %197 = vmatpush.msra.mxu0 %v76
    %198 = vmatpush.msra.mxu0 %v75
    %199 = vmatpush.msra.mxu0 %v74
    %200 = vmatpush.msra.mxu0 %v73
    %201 = vmatpush.msra.mxu0 %v72
    %202 = vmatpush.msra.mxu0 %v71
    %203 = vmatpush.msra.mxu0 %v70
    %204 = vmatpush.msra.mxu0 %v69
    %205 = vmatmul.f32.gmra.mxu0 %v176
    %v206 = vpop.f32.mrf.mxu0
    %v207 = vadd.f32 %v187, %v206
    %208 = vmatmul.f32.gmra.mxu0 %v178
    %v209 = vpop.f32.mrf.mxu0
    %v210 = vadd.f32 %v187, %v209
    %211 = vmatmul.f32.gmra.mxu0 %v180
    %v212 = vpop.f32.mrf.mxu0
    %v213 = vadd.f32 %v187, %v212
    %214 = vmatmul.f32.gmra.mxu0 %v182
    %v215 = vpop.f32.mrf.mxu0
    %v216 = vadd.f32 %v187, %v215
    %217 = vmatmul.f32.gmra.mxu0 %v184
    %v218 = vpop.f32.mrf.mxu0
    %v219 = vadd.f32 %v187, %v218
    %220 = vdwg.mxu0
    %221 = vmatpush.msra.mxu0 %v100
    %222 = vmatpush.msra.mxu0 %v99
    %223 = vmatpush.msra.mxu0 %v98
    %224 = vmatpush.msra.mxu0 %v97
    %225 = vmatpush.msra.mxu0 %v96
    %226 = vmatpush.msra.mxu0 %v95
    %227 = vmatpush.msra.mxu0 %v94
    %228 = vmatpush.msra.mxu0 %v93
    %229 = vmatpush.msra.mxu0 %v92
    %230 = vmatpush.msra.mxu0 %v91
    %231 = vmatpush.msra.mxu0 %v90
    %232 = vmatpush.msra.mxu0 %v89
    %233 = vmatpush.msra.mxu0 %v88
    %234 = vmatpush.msra.mxu0 %v87
    %235 = vmatpush.msra.mxu0 %v86
    %236 = vmatpush.msra.mxu0 %v85
    %237 = vmatmul.f32.gmra.mxu0 %v177
    %v238 = vpop.f32.mrf.mxu0
    %v239 = vadd.f32 %v207, %v238
    %240 = vmatmul.f32.gmra.mxu0 %v179
    %v241 = vpop.f32.mrf.mxu0
    %v242 = vadd.f32 %v210, %v241
    %243 = vmatmul.f32.gmra.mxu0 %v181
    %v244 = vpop.f32.mrf.mxu0
    %v245 = vadd.f32 %v213, %v244
    %246 = vmatmul.f32.gmra.mxu0 %v183
    %v247 = vpop.f32.mrf.mxu0
    %v248 = vadd.f32 %v216, %v247
    %249 = vmatmul.f32.gmra.mxu0 %v185
    %v250 = vpop.f32.mrf.mxu0
    %v251 = vadd.f32 %v219, %v250
    %252 = vdwg.mxu0
    %vm253 = vcmask 130048
    %254 = vst.msk [vmem:[%s5] sm:$0xff] %vm253, %v239
    %255 = vst.msk [vmem:[%s5 + $0x8] sm:$0xff] %vm253, %v242
    %256 = vst.msk [vmem:[%s5 + $0x10] sm:$0xff] %vm253, %v245
    %257 = vst.msk [vmem:[%s5 + $0x18] sm:$0xff] %vm253, %v248
    %vm258 = vcmask 128000
    %259 = vst.msk [vmem:[%s5 + $0x20] sm:$0x3f] %vm258, %v251
    // Predicated region
    $region26: #{tpu_custom_call.1} parent=1 // pred_check
      _
    $region27: #{tpu_custom_call.1} parent=1 // pred_check_branch
      %261 = sbr.rel (0) target = $region29
    $region28: #{tpu_custom_call.1} parent=1 // pred_region
      _
    $region29: #{tpu_custom_call.1} parent=1 // pred_fallthru
      _
    // Predicated region
    $region30: #{tpu_custom_call.1} parent=1 // pred_check
      _
    $region31: #{tpu_custom_call.1} parent=1 // pred_check_branch
      %263 = sbr.rel (0) target = $region33
    $region32: #{tpu_custom_call.1} parent=1 // pred_region
      _
    $region33: #{tpu_custom_call.1} parent=1 // pred_fallthru
      _
    %264 = vsyncpa [#allocation3], 1

</llo_original>
